<compile_context>
chip_gen: v7x
topology: tpu7x:2x2x1
jax: 0.10.0
libtpu: 0.0.40
codegen_flags: <defaults>
</compile_context>

<pallas_src>
import jax
import jax.numpy as jnp
from jax.experimental import pallas as pl
from jax.experimental.pallas import tpu as pltpu


def _pooler_kernel(x_ref, w_hbm, b_ref, o_ref, max_acc, w_vmem, w_sem):
    # x_ref:   (tb, ts, H)  last-layer hidden-state tile (input dtype), VMEM
    # w_hbm:   (H, H)       dense weight in (in, out) layout, raw HBM ref
    # b_ref:   (1, H)       dense bias, VMEM
    # o_ref:   (tb, H)      output tile, VMEM
    # max_acc: (tb, H) f32  running max over the sequence axis, VMEM scratch
    # w_vmem:  (H, H)       VMEM staging buffer for the weight
    # w_sem:   DMA semaphore for the weight copy
    s = pl.program_id(1)
    last_s = pl.num_programs(1) - 1

    @pl.when(s == 0)
    def _init():
        max_acc[...] = jnp.full_like(max_acc, -jnp.inf)
        # Kick off the dense-weight fetch; it is only consumed in the epilogue,
        # so the DMA overlaps the whole sequence reduction.  (Started once per
        # batch tile; start/wait are balanced per tile, megacore-safe.)
        pltpu.make_async_copy(w_hbm, w_vmem, w_sem).start()

    # Sequence-max of this tile in the input dtype (no full-block f32 cast),
    # then fold into the f32 running max.
    tile_max = jnp.max(x_ref[...], axis=1)                           # (tb, H)
    max_acc[...] = jnp.maximum(max_acc[...], tile_max.astype(jnp.float32))

    @pl.when(s == last_s)
    def _epilogue():
        pltpu.make_async_copy(w_hbm, w_vmem, w_sem).wait()
        pooled = max_acc[...].astype(w_vmem.dtype)                   # (tb, H)
        y = jnp.dot(pooled, w_vmem[...],
                    preferred_element_type=jnp.float32)              # MXU, f32 acc
        y = y + b_ref[...].astype(jnp.float32)
        o_ref[...] = jnp.tanh(y).astype(o_ref.dtype)


def _pick_tile(total: int, target: int, multiple: int) -> int:
    """Largest divisor of `total` that is a multiple of `multiple` and <= target.

    Falls back to `total` (full extent), which is always legal for BlockSpecs.
    """
    best = None
    upper = min(total, target)
    for cand in range(multiple, upper + 1, multiple):
        if total % cand == 0:
            best = cand
    return best if best is not None else total


def llama_pooler(hidden_states: jax.Array, weight: jax.Array, bias: jax.Array) -> jax.Array:
    """hidden_states: [L, B, S, H]; weight: [H, H] (out, in) like nn.Linear; bias: [H]."""
    L, B, S, H = hidden_states.shape
    w_t = weight.T                       # (in, out) so kernel does pooled @ w_t
    b2d = bias.reshape(1, H)

    # Sublane packing for the streamed dtype (f32 -> 8, bf16 -> 16, int8/fp8 -> 32).
    itemsize = jnp.dtype(hidden_states.dtype).itemsize
    sub_mult = max(8, 32 // max(itemsize, 1))

    # Batch tile first, then size the sequence tile to ~8 MiB per x block
    # (lane-dense: full H on the lane axis; BlockSpec double-buffers it).
    tb = _pick_tile(B, 8, 1)
    bytes_per_row = H * itemsize
    target_ts = max(sub_mult, (8 * 1024 * 1024) // max(bytes_per_row * tb, 1))
    ts = _pick_tile(S, target_ts, sub_mult)

    grid = (B // tb, S // ts)
    layer = L - 1                        # static: select last layer in the BlockSpec

    return pl.pallas_call(
        _pooler_kernel,
        out_shape=jax.ShapeDtypeStruct((B, H), hidden_states.dtype),
        grid=grid,
        in_specs=[
            # Squeezed L dim: DMA directly from the stacked tensor at layer L-1.
            pl.BlockSpec((None, tb, ts, H), lambda b, s: (layer, b, s, 0)),
            # Weight stays in HBM; the kernel stages it manually (overlapped DMA).
            pl.BlockSpec(memory_space=pl.ANY),
            pl.BlockSpec((1, H), lambda b, s: (0, 0)),
        ],
        out_specs=pl.BlockSpec((tb, H), lambda b, s: (b, 0)),
        scratch_shapes=[
            pltpu.VMEM((tb, H), jnp.float32),    # running max accumulator
            pltpu.VMEM((H, H), w_t.dtype),       # weight staging buffer (single)
            pltpu.SemaphoreType.DMA(()),         # weight DMA completion
        ],
        compiler_params=pltpu.CompilerParams(
            dimension_semantics=("parallel", "arbitrary")),
    )(hidden_states, w_t, b2d)


def _reference(hidden_states, weight, bias):
    x = hidden_states[-1].astype(jnp.float32)
    pooled = jnp.max(x, axis=1)
    return jnp.tanh(pooled @ weight.T.astype(jnp.float32) + bias.astype(jnp.float32))


if __name__ == "__main__":
    key = jax.random.PRNGKey(0)
    k1, k2, k3 = jax.random.split(key, 3)

    L, B, S, H = 3, 2, 8, 32   # small shapes consistent with the module
    hidden_states = jax.random.normal(k1, (L, B, S, H), dtype=jnp.float32)

    # Deterministic "nn.Linear(H, H)" parameters (synthetic init).
    weight = jax.random.normal(k2, (H, H), dtype=jnp.float32) * (1.0 / jnp.sqrt(H))
    bias = jax.random.normal(k3, (H,), dtype=jnp.float32) * 0.01

    out = llama_pooler(hidden_states, weight, bias)
    jax.block_until_ready(out)

    ref = _reference(hidden_states, weight, bias)
    assert out.shape == (B, H)
    assert jnp.allclose(out, ref, atol=1e-5, rtol=1e-5), "mismatch vs reference"

    print("KERNEL_OK")
</pallas_src>

<mosaic_0001>
module attributes {stable_mosaic.version = 11 : i64} {
  func.func @_pooler_kernel(%arg0: i32, %arg1: i32, %arg2: memref<1x2x8x32xf32, #tpu.memory_space<vmem>>, %arg3: memref<32x32xf32, #tpu.memory_space<any>>, %arg4: memref<1x32xf32, #tpu.memory_space<vmem>>, %arg5: memref<2x32xf32, #tpu.memory_space<vmem>>, %arg6: memref<2x32xf32, #tpu.memory_space<vmem>>, %arg7: memref<32x32xf32, #tpu.memory_space<vmem>>, %arg8: memref<!tpu.dma_semaphore, #tpu.memory_space<semaphore_mem>>) attributes {dimension_semantics = [#tpu.dimension_semantics<parallel>, #tpu.dimension_semantics<arbitrary>], iteration_bounds = array<i64: 1, 1>, scalar_prefetch = 0 : i64, scratch_operands = 3 : i64, tpu.core_type = #tpu.core_type<tc>, window_params = [{transform_indices = @transform_0, window_bounds = array<i64: 1, 2, 8, 32>}, {}, {pipeline_mode = #tpu.pipeline_mode<synchronous>, transform_indices = @transform_2, window_bounds = array<i64: 1, 32>}, {transform_indices = @transform_3, window_bounds = array<i64: 2, 32>}]} {
    %c0_i32 = arith.constant 0 : i32
    %0 = arith.cmpi eq, %arg1, %c0_i32 : i32
    %1 = arith.extui %0 : i1 to i32
    %c0_i32_0 = arith.constant 0 : i32
    %2 = arith.cmpi ne, %1, %c0_i32_0 : i32
    scf.if %2 {
      %cst_10 = arith.constant 0xFF800000 : f32
      %12 = vector.broadcast %cst_10 : f32 to vector<2x32xf32>
      %c0_11 = arith.constant 0 : index
      %c0_12 = arith.constant 0 : index
      %13 = vector.load %arg6[%c0_11, %c0_12] : memref<2x32xf32, #tpu.memory_space<vmem>>, vector<2x32xf32>
      tpu.vector_store %arg6[%c0_11, %c0_12], %12 {strides = array<i32>} : memref<2x32xf32, #tpu.memory_space<vmem>>, vector<2x32xf32>,
      tpu.enqueue_dma source(%arg3 : memref<32x32xf32, #tpu.memory_space<any>>) target(%arg7 : memref<32x32xf32, #tpu.memory_space<vmem>>) target_semaphore(%arg8 : memref<!tpu.dma_semaphore, #tpu.memory_space<semaphore_mem>>)
    } else {
    }
    %c0 = arith.constant 0 : index
    %c0_1 = arith.constant 0 : index
    %c0_2 = arith.constant 0 : index
    %c0_3 = arith.constant 0 : index
    %3 = vector.load %arg2[%c0, %c0_1, %c0_2, %c0_3] : memref<1x2x8x32xf32, #tpu.memory_space<vmem>>, vector<1x2x8x32xf32>
    %4 = vector.shape_cast %3 : vector<1x2x8x32xf32> to vector<2x8x32xf32>
    %cst = arith.constant dense<0xFF800000> : vector<2x32xf32>
    %5 = vector.multi_reduction <maximumf>, %4, %cst [1] : vector<2x8x32xf32> to vector<2x32xf32>
    %c0_4 = arith.constant 0 : index
    %c0_5 = arith.constant 0 : index
    %6 = vector.load %arg6[%c0_4, %c0_5] : memref<2x32xf32, #tpu.memory_space<vmem>>, vector<2x32xf32>
    %7 = arith.maximumf %6, %5 : vector<2x32xf32>
    %c0_6 = arith.constant 0 : index
    %c0_7 = arith.constant 0 : index
    %8 = vector.load %arg6[%c0_6, %c0_7] : memref<2x32xf32, #tpu.memory_space<vmem>>, vector<2x32xf32>
    tpu.vector_store %arg6[%c0_6, %c0_7], %7 {strides = array<i32>} : memref<2x32xf32, #tpu.memory_space<vmem>>, vector<2x32xf32>,
    %c0_i32_8 = arith.constant 0 : i32
    %9 = arith.cmpi eq, %arg1, %c0_i32_8 : i32
    %10 = arith.extui %9 : i1 to i32
    %c0_i32_9 = arith.constant 0 : i32
    %11 = arith.cmpi ne, %10, %c0_i32_9 : i32
    scf.if %11 {
      tpu.wait_dma2 semaphore(%arg8 : memref<!tpu.dma_semaphore, #tpu.memory_space<semaphore_mem>>) src(%arg3 : memref<32x32xf32, #tpu.memory_space<any>>) dst(%arg7 : memref<32x32xf32, #tpu.memory_space<vmem>>)
      %c0_10 = arith.constant 0 : index
      %c0_11 = arith.constant 0 : index
      %12 = vector.load %arg6[%c0_10, %c0_11] : memref<2x32xf32, #tpu.memory_space<vmem>>, vector<2x32xf32>
      %c0_12 = arith.constant 0 : index
      %c0_13 = arith.constant 0 : index
      %13 = vector.load %arg7[%c0_12, %c0_13] : memref<32x32xf32, #tpu.memory_space<vmem>>, vector<32x32xf32>
      %cst_14 = arith.constant dense<0.000000e+00> : vector<2x32xf32>
      %14 = tpu.matmul %12, %13, %cst_14 {dimension_numbers = #tpu.dot_dimension_numbers<[1], [0], [0], [1], [0, 0, 1, 1], [], []>} : vector<2x32xf32>, vector<32x32xf32>, vector<2x32xf32> -> vector<2x32xf32>
      %c0_15 = arith.constant 0 : index
      %c0_16 = arith.constant 0 : index
      %15 = vector.load %arg4[%c0_15, %c0_16] : memref<1x32xf32, #tpu.memory_space<vmem>>, vector<1x32xf32>
      %16 = vector.broadcast %15 : vector<1x32xf32> to vector<2x32xf32>
      %17 = arith.addf %14, %16 : vector<2x32xf32>
      %18 = math.tanh %17 : vector<2x32xf32>
      %c0_17 = arith.constant 0 : index
      %c0_18 = arith.constant 0 : index
      %19 = vector.load %arg5[%c0_17, %c0_18] : memref<2x32xf32, #tpu.memory_space<vmem>>, vector<2x32xf32>
      tpu.vector_store %arg5[%c0_17, %c0_18], %18 {strides = array<i32>} : memref<2x32xf32, #tpu.memory_space<vmem>>, vector<2x32xf32>,
    } else {
    }
    return
  }
  func.func @transform_0(%arg0: i32, %arg1: i32) -> (i32, i32, i32, i32) {
    %c2_i32 = arith.constant 2 : i32
    %c0_i32 = arith.constant 0 : i32
    %c0_i32_0 = arith.constant 0 : i32
    return %c2_i32, %arg0, %arg1, %c0_i32 : i32, i32, i32, i32
  }
  func.func @transform_2(%arg0: i32, %arg1: i32) -> (i32, i32) {
    %c0_i32 = arith.constant 0 : i32
    %c0_i32_0 = arith.constant 0 : i32
    %c0_i32_1 = arith.constant 0 : i32
    return %c0_i32, %c0_i32_0 : i32, i32
  }
  func.func @transform_3(%arg0: i32, %arg1: i32) -> (i32, i32) {
    %c0_i32 = arith.constant 0 : i32
    %c0_i32_0 = arith.constant 0 : i32
    return %arg0, %c0_i32 : i32, i32
  }
}

</mosaic_0001>

<llo_original>
// kernel: tpu_custom_call.1
$region0: #{tpu_custom_call.1}
  #allocation0 [shape = 'u32[]', space=smem, size = 0x4, offset = 0x4, fixed_abs, tag = 'smem constant byte address 0x4 - core index']
  #allocation1 [shape = 'u32[144,128]{1,0:T(1,128)}', space=vmem, size = 0x12000, scoped, tag = 'internal scratch']
  #allocation2 [shape = 'f32[2,32]{1,0:T(2,128)}', space=vmem, size = 0x400, scoped, tag = 'scratch operand']
  #allocation3 [shape = 'f32[32,32]{1,0:T(8,128)}', space=vmem, size = 0x4000, scoped, tag = 'scratch operand']
  #allocation4 [shape = 's32[1]{0}', space=sflag, size = 0x4, scoped, tag = 'scratch operand']
  #allocation9 [shape = 's32[]', space=sflag, size = 0x4, offset = 0, fixed_abs, tag = 'sflag constant byte address 0x0 - dummy sync flag']
  #allocation10 [shape = 's32[]', space=sflag, size = 0x4, offset = 0, fixed_abs, tag = 'sflag constant byte address 0x0 - dummy sync flag']
  #allocation11 [shape = 'u32[]', space=smem, size = 0x4, offset = 0x44, fixed_abs, tag = 'smem constant byte address 0x44 - assertion arg 0']
  #allocation12 [shape = 'u32[]', space=smem, size = 0x4, offset = 0x48, fixed_abs, tag = 'smem constant byte address 0x48 - assertion arg 1']
  %s0 = inlined_call_operand.hbm [shape: f32[3,2,8,32], index: 0, kind: input, shape index: {}]
  %s1 = inlined_call_operand.hbm [shape: f32[32,32], index: 1, kind: input, shape index: {}]
  %s2 = inlined_call_operand.vmem [shape: f32[1,32], index: 2, kind: input, shape index: {}]
  %s3 = inlined_call_operand.hbm [shape: f32[2,32], index: 3, kind: output, shape index: {}]
  %s4 = sld [smem:[#allocation0]]
  $region34: #{tpu_custom_call.1} parent=0
    _
  %s6 = ssub.s32 1, %s4
  %s7 = scalar_select 0, %s6, %s4
  $region1: #{tpu_custom_call.1} parent=0
    #allocation5 [shape = 'u8[8192]{0}', space=vmem, size = 0x2000, scoped, tag = 'input window, operand 0, single buffered']
    #allocation6 [shape = 's32[1]{0}', space=sflag, size = 0x4, scoped, tag = 'scoped memory for tpu_custom_call.1']
    #allocation7 [shape = 's32[1]{0}', space=sflag, size = 0x4, scoped, tag = 'scoped memory for tpu_custom_call.1']
    #allocation8 [shape = 'u8[1024]{0}', space=vmem, size = 0x400, scoped, tag = 'output window, operand 0, single buffered']
    %8 = vsyncpa [#allocation6], 0
    %9 = vsyncpa [#allocation7], 0
    // Predicated region
    $region2: #{tpu_custom_call.1} parent=1 // pred_check
      _
    $region3: #{tpu_custom_call.1} parent=1 // pred_check_branch
      %11 = sbr.rel (0) target = $region5
    $region4: #{tpu_custom_call.1} parent=1 // pred_region
      %s13 = ssub.s32 256, 256
      %14 = vsyncadd [#allocation6], %s13
      %s15 = scalar_lea.hbm %s0, 512
      %s16 = sshll.u32 [#allocation5], 4
      %s17 = int_to_ptr.vmem [resolvable:$true] %s16
      %22 = dma.hbm_to_vmem [thread:$0]  %s15, 256, %s17, [#allocation6], 128, 128, 8
    $region5: #{tpu_custom_call.1} parent=1 // pred_fallthru
      _
    // Predicated region
    $region6: #{tpu_custom_call.1} parent=1 // pred_check
      _
    $region7: #{tpu_custom_call.1} parent=1 // pred_check_branch
      %24 = sbr.rel (0) target = $region9
    $region8: #{tpu_custom_call.1} parent=1 // pred_region
      _
    $region9: #{tpu_custom_call.1} parent=1 // pred_fallthru
      _
    // Predicated region
    $region10: #{tpu_custom_call.1} parent=1 // pred_check
      _
    $region11: #{tpu_custom_call.1} parent=1 // pred_check_branch
      %26 = sbr.rel (0) target = $region13
    $region12: #{tpu_custom_call.1} parent=1 // pred_region
      %27 = dma.done [#allocation6], 256
    $region13: #{tpu_custom_call.1} parent=1 // pred_fallthru
      _
    %p28 = scmp.eq.s32.totalorder 0, 0
    // Predicated region
    $region14: #{tpu_custom_call.1} parent=1 // pred_check
      %p29 = pneg %p28
    $region15: #{tpu_custom_call.1} parent=1 // pred_check_branch
      %31 = sbr.rel (%p29) target = $region17
    $region16: #{tpu_custom_call.1} parent=1 // pred_region
      %vm32 = vcmask 254976
      %33 = vst.msk [vmem:[#allocation2] sm:$0x3] %vm32, -inf
      // Predicated region
      $region18: #{tpu_custom_call.1} parent=16 // pred_check
        _
      $region19: #{tpu_custom_call.1} parent=16 // pred_check_branch
        %35 = sbr.rel target = $region21
      $region20: #{tpu_custom_call.1} parent=16 // pred_region
        %36 = sst [smem:[#allocation11]] [#allocation10]
        %37 = sst [smem:[#allocation12]] [#allocation9]
      $region21: #{tpu_custom_call.1} parent=16 // pred_fallthru
        _
      %39 = shalt.err (0)
      %s41 = sshll.u32 [#allocation3], 4
      %s42 = int_to_ptr.vmem [resolvable:$true] %s41
      %44 = dma.hbm_to_vmem [thread:$0]  %s1, 512, %s42, [#allocation4]
    $region17: #{tpu_custom_call.1} parent=1 // pred_fallthru
      _
    %v45 = vld [vmem:[#allocation5] sm:$0xff]
    %v46 = vld [vmem:[#allocation5 + $0x8] sm:$0xff]
    %vm47 = vcmask 261120
    %v48 = vsel %vm47, %v45, -inf
    %v49 = vrot.slane %v48, 4
    %v50 = vmax.f32 %v48, %v49
    %v51 = vrot.slane %v50, 2
    %v52 = vmax.f32 %v50, %v51
    %v53 = vrot.slane %v52, 1
    %v54 = vmax.f32 %v52, %v53
    %v55 = vsel %vm47, %v46, -inf
    %v56 = vrot.slane %v55, 4
    %v57 = vmax.f32 %v55, %v56
    %v58 = vrot.slane %v57, 2
    %v59 = vmax.f32 %v57, %v58
    %v60 = vrot.slane %v59, 1
    %v61 = vmax.f32 %v59, %v60
    %v62 = vld [vmem:[#allocation2] sm:$0x3]
    %vm65 = vcmask 1041409
    %v66 = vsel %vm65, %v61, %v54
    %v68 = vmax.f32 %v62, %v66
    %vm69 = vcmask 254976
    %70 = vst.msk [vmem:[#allocation2] sm:$0x3] %vm69, %v68
    // Predicated region
    $region22: #{tpu_custom_call.1} parent=1 // pred_check
      %p71 = pneg %p28
    $region23: #{tpu_custom_call.1} parent=1 // pred_check_branch
      %73 = sbr.rel (%p71) target = $region25
    $region24: #{tpu_custom_call.1} parent=1 // pred_region
      %s74 = smul.u32 32, 1
      %s75 = sshll.u32 %s74, 4
      %76 = dma.done [#allocation4], %s75
      %v77 = vld [vmem:[#allocation2] sm:$0x3]
      %v78 = vld [vmem:[#allocation3] sm:$0xff]
      %v79 = vld [vmem:[#allocation3 + $0x8] sm:$0xff]
      %v80 = vld [vmem:[#allocation3 + $0x10] sm:$0xff]
      %v81 = vld [vmem:[#allocation3 + $0x18] sm:$0xff]
      %v82 = vld [vmem:[%s2] sm:$0x1]
      %v84 = vlaneseq
      %v85 = vshrl.u32 %v84, 7
      %v86 = vsub.s32 0, %v85
      %v87 = vrot.slane %v82, %v86
      %v90 = vsel %vm47, %v77, 0
      %92 = vmatprep.subr.mxu0 0.0
      %93 = vmatpush1.msra.mxu0 %v78
      %94 = vmatprep.subr.mxu0 0.0
      %95 = vmatpush1.msra.mxu0 %v79
      %96 = vmatprep.subr.mxu0 0.0
      %97 = vmatpush1.msra.mxu0 %v80
      %98 = vmatprep.subr.mxu0 0.0
      %99 = vmatpush1.msra.mxu0 %v81
      %100 = vmatprep.subr.mxu0 0.0
      %101 = vmatpush1.msra.mxu0 0.0
      %102 = vmatprep.subr.mxu0 0.0
      %103 = vmatpush1.msra.mxu0 0.0
      %104 = vmatprep.subr.mxu0 0.0
      %105 = vmatpush1.msra.mxu0 0.0
      %106 = vmatprep.subr.mxu0 0.0
      %107 = vmatpush1.msra.mxu0 0.0
      %108 = vmatprep.subr.mxu0 0.0
      %109 = vmatpush1.msra.mxu0 0.0
      %110 = vmatprep.subr.mxu0 0.0
      %111 = vmatpush1.msra.mxu0 0.0
      %112 = vmatprep.subr.mxu0 0.0
      %113 = vmatpush1.msra.mxu0 0.0
      %114 = vmatprep.subr.mxu0 0.0
      %115 = vmatpush1.msra.mxu0 0.0
      %116 = vmatprep.subr.mxu0 0.0
      %117 = vmatpush1.msra.mxu0 0.0
      %118 = vmatprep.subr.mxu0 0.0
      %119 = vmatpush1.msra.mxu0 0.0
      %120 = vmatprep.subr.mxu0 0.0
      %121 = vmatpush1.msra.mxu0 0.0
      %122 = vmatprep.subr.mxu0 0.0
      %123 = vmatpush1.msra.mxu0 0.0
      %124 = vmatprep.subr.mxu0 0.0
      %125 = vmatpush1.msra.mxu0 0.0
      %126 = vmatprep.subr.mxu0 0.0
      %127 = vmatpush1.msra.mxu0 0.0
      %128 = vmatprep.subr.mxu0 0.0
      %129 = vmatpush1.msra.mxu0 0.0
      %130 = vmatprep.subr.mxu0 0.0
      %131 = vmatpush1.msra.mxu0 0.0
      %132 = vmatprep.subr.mxu0 0.0
      %133 = vmatpush1.msra.mxu0 0.0
      %134 = vmatprep.subr.mxu0 0.0
      %135 = vmatpush1.msra.mxu0 0.0
      %136 = vmatprep.subr.mxu0 0.0
      %137 = vmatpush1.msra.mxu0 0.0
      %138 = vmatprep.subr.mxu0 0.0
      %139 = vmatpush1.msra.mxu0 0.0
      %140 = vmatprep.subr.mxu0 0.0
      %141 = vmatpush1.msra.mxu0 0.0
      %142 = vmatprep.subr.mxu0 0.0
      %143 = vmatpush1.msra.mxu0 0.0
      %144 = vmatprep.subr.mxu0 0.0
      %145 = vmatpush1.msra.mxu0 0.0
      %146 = vmatprep.subr.mxu0 0.0
      %147 = vmatpush1.msra.mxu0 0.0
      %148 = vmatprep.subr.mxu0 0.0
      %149 = vmatpush1.msra.mxu0 0.0
      %150 = vmatprep.subr.mxu0 0.0
      %151 = vmatpush1.msra.mxu0 0.0
      %152 = vmatprep.subr.mxu0 0.0
      %153 = vmatpush1.msra.mxu0 0.0
      %154 = vmatprep.subr.mxu0 0.0
      %155 = vmatpush1.msra.mxu0 0.0
      %156 = vmatprep.mubr.f32.mxu0 0.0
      %157 = vmatmul.mubr.f32.gmra.mrb[0].mxu0 %v90
      %v158 = vpop.f32.mrb[0].mxu0
      %v159 = vadd.f32 %v87, %v158
      %v160 = vpop.f32.mrb[0].mxu0
      %161 = vdwg.mxu0
      %v162 = vtanh.pop %v159
      %163 = vst.msk [vmem:[#allocation8] sm:$0x3] %vm69, %v162
    $region25: #{tpu_custom_call.1} parent=1 // pred_fallthru
      _
    // Predicated region
    $region26: #{tpu_custom_call.1} parent=1 // pred_check
      _
    $region27: #{tpu_custom_call.1} parent=1 // pred_check_branch
      %165 = sbr.rel (0) target = $region29
    $region28: #{tpu_custom_call.1} parent=1 // pred_region
      %s167 = ssub.s32 32, 32
      %168 = vsyncadd [#allocation7], %s167
      %s170 = sshll.u32 [#allocation8], 4
      %s171 = int_to_ptr.vmem [resolvable:$true] %s170
      %173 = dma.vmem_to_hbm [thread:$0]  %s171, 32, %s3, [#allocation7]
    $region29: #{tpu_custom_call.1} parent=1 // pred_fallthru
      _
    // Predicated region
    $region30: #{tpu_custom_call.1} parent=1 // pred_check
      _
    $region31: #{tpu_custom_call.1} parent=1 // pred_check_branch
      %175 = sbr.rel (0) target = $region33
    $region32: #{tpu_custom_call.1} parent=1 // pred_region
      %176 = dma.done [#allocation7], 32
    $region33: #{tpu_custom_call.1} parent=1 // pred_fallthru
      _
    %177 = vsyncpa [#allocation6], 1
    %178 = vsyncpa [#allocation7], 1
  %179 = vsyncmov [#allocation4]
  %s180 = vpop.sfrf %179
  %p181 = scmp.eq.s32.totalorder %s180, 0
  %p182 = pneg %p181
  %184 = shalt.err (%p182)

</llo_original>
